<compile_context>
chip_gen: v7x
topology: tpu7x:2x2x1
jax: 0.10.0
libtpu: 0.0.40
codegen_flags: <defaults>
</compile_context>

<pallas_src>
import functools
import math

import jax
import jax.numpy as jnp
import numpy as np
from jax.experimental import pallas as pl
from jax.experimental.pallas import tpu as pltpu


# F.binary_cross_entropy_with_logits(x, y) with x in {0,1}, y in {0,1}:
#   x = 0 (any y): log(2)
#   x = 1, y = 1 : log1p(exp(-1))
#   x = 1, y = 0 : 1 + log1p(exp(-1))
_BCE_X0 = math.log(2.0)
_BCE_X1_Y1 = math.log1p(math.exp(-1.0))
_BCE_X1_Y0 = 1.0 + _BCE_X1_Y1

_PALLAS_MIN_ELEMENTS = 100_000        # below this, launch/DMA overhead dominates
_BLOCK_BYTES_BUDGET = 4 << 20         # per-step input bytes (2x-buffered -> ~8 MiB VMEM)
_VMEM_LIMIT_BYTES = 32 * 1024 * 1024  # explicit scoped-VMEM limit (safe on v5e/v6e/v7x)


def _pick_batch_block(batch, per_row_bytes, budget_bytes=_BLOCK_BYTES_BUDGET):
    """Largest multiple-of-8 divisor of `batch` whose per-step block fits the budget."""
    if batch % 8 != 0:
        return batch  # full-extent second-to-last dim is always legal (small batches)
    for cand in (1024, 512, 256, 128, 64, 32, 16, 8):
        if batch % cand == 0 and cand * per_row_bytes <= budget_bytes:
            return cand
    return 8


def _combined_loss_kernel(pts_ref, pv_ref, tmdo_ref, grp_ref, out_ref, acc_ref, *,
                          alpha, beta, gamma, delta, epsilon,
                          inv_n_price, inv_n_tmdo, inv_n_group):
    step = pl.program_id(0)

    @pl.when(step == 0)
    def _init():
        for k in range(4):
            acc_ref[k] = jnp.float32(0.0)

    # Elementwise phase in the native input dtype; sums accumulated in f32.
    fp = pts_ref[0]            # [bB, P]  final-timestep predictions
    tg = pts_ref[1]            # [bB, P]  targets
    pv = pv_ref[...]           # [bB, 1]  prev_price -> broadcast in-VMEM

    diff = (fp - tg).astype(jnp.float32)
    pred_diff = fp - pv
    target_diff = tg - pv

    # BCE-with-logits where the "logits"/targets are the 0/1 indicators: a pure
    # compare+select over three constants (faithful to the PyTorch reference).
    bce = jnp.where(pred_diff > 0,
                    jnp.where(target_diff > 0, _BCE_X1_Y1, _BCE_X1_Y0),
                    _BCE_X0)

    acc_ref[0] = acc_ref[0] + jnp.sum(diff * diff)
    acc_ref[1] = acc_ref[1] + jnp.sum(bce)
    acc_ref[2] = acc_ref[2] + jnp.sum(jnp.abs(pred_diff).astype(jnp.float32))
    acc_ref[3] = acc_ref[3] + jnp.sum(jnp.abs(tmdo_ref[...]).astype(jnp.float32))

    @pl.when(step == pl.num_programs(0) - 1)
    def _finalize():
        mse = acc_ref[0] * inv_n_price
        direction = acc_ref[1] * inv_n_price
        smooth = acc_ref[2] * inv_n_price
        # Data-dependent python branch in the reference -> branchless select.
        smooth = jnp.where(smooth > 0.5, smooth * 1.5, smooth)
        tmdo = acc_ref[3] * inv_n_tmdo

        # Group consistency: sum_i mean(|x_i - mean_f(x_i)|)/G == mean(|x - mean_f(x)|).
        # Layout is [Fg, B*G] (big axis on lanes) so the per-group mean is a dense
        # sublane reduce rather than a mostly-masked cross-lane reduce.
        g = grp_ref[...].astype(jnp.float32)
        mu = jnp.mean(g, axis=0, keepdims=True)
        group = jnp.sum(jnp.abs(g - mu)) * inv_n_group

        total = (alpha * mse + beta * direction + gamma * smooth
                 + delta * tmdo + epsilon * group)
        out_ref[0] = total
        out_ref[1] = mse
        out_ref[2] = direction
        out_ref[3] = smooth
        out_ref[4] = tmdo
        out_ref[5] = group


def _pallas_loss_vector(predictions, targets, prev_price, tmdo_features,
                        group_features, alpha, beta, gamma, delta, epsilon):
    B, T, P = predictions.shape
    _, Tt, Ft = tmdo_features.shape
    _, G, Fg = group_features.shape
    dtype = predictions.dtype

    # Only the final timestep is ever used -> slice before the kernel sees HBM.
    final_pred = predictions[:, -1, :]                              # [B, P]
    # One packed "price" slab: a single BlockSpec/DMA stream serves fp and tg.
    pts = jnp.stack([final_pred, targets.astype(dtype)])            # [2, B, P]
    pv = prev_price.astype(dtype).reshape(B, 1)                     # broadcast in-kernel
    tmdo2 = tmdo_features.reshape(B, Tt * Ft)                       # lane axis = T*Ft
    grp_t = jnp.swapaxes(group_features.reshape(B * G, Fg), 0, 1)   # [Fg, B*G]

    per_row_bytes = (np.dtype(dtype).itemsize * (2 * P + 1)
                     + np.dtype(tmdo_features.dtype).itemsize * Tt * Ft)
    bB = _pick_batch_block(B, per_row_bytes)
    grid = (B // bB,)

    kernel = functools.partial(
        _combined_loss_kernel,
        alpha=float(alpha), beta=float(beta), gamma=float(gamma),
        delta=float(delta), epsilon=float(epsilon),
        inv_n_price=1.0 / float(B * P),
        inv_n_tmdo=1.0 / float(B * Tt * Ft),
        inv_n_group=1.0 / float(B * G * Fg))

    return pl.pallas_call(
        kernel,
        out_shape=jax.ShapeDtypeStruct((6,), jnp.float32),
        grid=grid,
        in_specs=[
            pl.BlockSpec((2, bB, P), lambda i: (0, i, 0)),        # packed fp/tg slab
            pl.BlockSpec((bB, 1), lambda i: (i, 0)),              # prev_price column
            pl.BlockSpec((bB, Tt * Ft), lambda i: (i, 0)),        # tmdo rows
            pl.BlockSpec((Fg, B * G), lambda i: (0, 0)),          # group (resident, tiny)
        ],
        out_specs=pl.BlockSpec(memory_space=pltpu.MemorySpace.SMEM),
        scratch_shapes=[pltpu.SMEM((4,), jnp.float32)],           # f32 partial sums
        compiler_params=pltpu.CompilerParams(
            dimension_semantics=("arbitrary",),                   # reduction axis
            vmem_limit_bytes=_VMEM_LIMIT_BYTES),
    )(pts, pv, tmdo2, grp_t)


def _jnp_loss_vector(predictions, targets, prev_price, tmdo_features,
                     group_features, alpha, beta, gamma, delta, epsilon):
    """Fused-XLA path for small inputs (and correctness reference)."""
    fp = predictions[:, -1, :].astype(jnp.float32)
    tg = targets.astype(jnp.float32)
    pv = prev_price.astype(jnp.float32)[:, None]
    mse = jnp.mean((fp - tg) ** 2)
    pred_diff = fp - pv
    target_diff = tg - pv
    bce = jnp.where(pred_diff > 0,
                    jnp.where(target_diff > 0, _BCE_X1_Y1, _BCE_X1_Y0),
                    _BCE_X0)
    direction = jnp.mean(bce)
    smooth = jnp.mean(jnp.abs(pred_diff))
    smooth = jnp.where(smooth > 0.5, smooth * 1.5, smooth)
    tmdo = jnp.mean(jnp.abs(tmdo_features.astype(jnp.float32)))
    g = group_features.astype(jnp.float32)
    mu = jnp.mean(g, axis=-1, keepdims=True)
    group = jnp.mean(jnp.abs(g - mu))
    total = (alpha * mse + beta * direction + gamma * smooth
             + delta * tmdo + epsilon * group)
    return jnp.stack([total, mse, direction, smooth, tmdo, group]).astype(jnp.float32)


@functools.partial(jax.jit, static_argnames=(
    "alpha", "beta", "gamma", "delta", "epsilon", "use_pallas"))
def _loss_vector(predictions, targets, prev_price, tmdo_features, group_features, *,
                 alpha, beta, gamma, delta, epsilon, use_pallas):
    args = (predictions, targets, prev_price, tmdo_features, group_features,
            alpha, beta, gamma, delta, epsilon)
    if use_pallas:
        return _pallas_loss_vector(*args)
    return _jnp_loss_vector(*args)


def enhanced_combined_loss(predictions, targets, prev_price, tmdo_features,
                           group_features, *, alpha=0.05, beta=0.9, gamma=0.0,
                           delta=0.05, epsilon=0.0, use_pallas=None,
                           return_metrics=True):
    """JAX/Pallas equivalent of EnhancedCombinedLoss.forward.

    Returns (total_loss_device_scalar, metrics_dict_of_python_floats | None).
    Building the metrics dict costs ONE host sync (like the reference's .item()
    calls); pass return_metrics=False inside a hot training step and pull the
    f32[6] vector asynchronously instead.
    """
    if use_pallas is None:
        n_elems = (2 * predictions.shape[0] * predictions.shape[2]
                   + prev_price.size + tmdo_features.size + group_features.size)
        use_pallas = n_elems >= _PALLAS_MIN_ELEMENTS
    out = _loss_vector(predictions, targets, prev_price, tmdo_features,
                       group_features, alpha=float(alpha), beta=float(beta),
                       gamma=float(gamma), delta=float(delta),
                       epsilon=float(epsilon), use_pallas=bool(use_pallas))
    total_loss = out[0]                 # stays on device
    if not return_metrics:
        return total_loss, None
    host = jax.device_get(out)          # single device->host transfer
    metrics = {
        'mse': float(host[1]),
        'direction': float(host[2]),
        'smoothness': float(host[3]),
        'tmdo_reg': float(host[4]),
        'group_consistency': float(host[5]),
    }
    return total_loss, metrics


if __name__ == "__main__":
    key = jax.random.PRNGKey(0)
    ks = jax.random.split(key, 10)

    # --- Small shapes consistent with the module; force the Pallas path. ---
    B, T, P = 2, 8, 4
    Ft = 8
    G, Fg = 3, 16
    predictions = jax.random.normal(ks[0], (B, T, P), dtype=jnp.float32)
    targets = jax.random.normal(ks[1], (B, P), dtype=jnp.float32)
    prev_price = jax.random.normal(ks[2], (B,), dtype=jnp.float32)
    tmdo_features = jax.random.normal(ks[3], (B, T, Ft), dtype=jnp.float32)
    group_features = jax.random.normal(ks[4], (B, G, Fg), dtype=jnp.float32)

    total, metrics = enhanced_combined_loss(
        predictions, targets, prev_price, tmdo_features, group_features,
        use_pallas=True)
    jax.block_until_ready(total)

    ref_total, ref_metrics = enhanced_combined_loss(
        predictions, targets, prev_price, tmdo_features, group_features,
        use_pallas=False)
    np.testing.assert_allclose(float(total), float(ref_total), rtol=1e-5, atol=1e-6)
    for name in metrics:
        np.testing.assert_allclose(metrics[name], ref_metrics[name],
                                   rtol=1e-5, atol=1e-6)

    # --- Larger shapes: auto-dispatch takes the gridded, pipelined Pallas path
    #     (multi-step batch grid with f32 partial-sum accumulation). ---
    Bl, Tl, Pl, Ftl, Gl, Fgl = 512, 64, 4, 64, 4, 16
    p_l = jax.random.normal(ks[5], (Bl, Tl, Pl), dtype=jnp.float32)
    t_l = jax.random.normal(ks[6], (Bl, Pl), dtype=jnp.float32)
    pp_l = jax.random.normal(ks[7], (Bl,), dtype=jnp.float32)
    tm_l = jax.random.normal(ks[8], (Bl, Tl, Ftl), dtype=jnp.float32)
    gf_l = jax.random.normal(ks[9], (Bl, Gl, Fgl), dtype=jnp.float32)

    total_l, metrics_l = enhanced_combined_loss(p_l, t_l, pp_l, tm_l, gf_l)
    jax.block_until_ready(total_l)
    ref_total_l, ref_metrics_l = enhanced_combined_loss(
        p_l, t_l, pp_l, tm_l, gf_l, use_pallas=False)
    np.testing.assert_allclose(float(total_l), float(ref_total_l),
                               rtol=1e-4, atol=1e-5)
    for name in metrics_l:
        np.testing.assert_allclose(metrics_l[name], ref_metrics_l[name],
                                   rtol=1e-4, atol=1e-5)

    print("KERNEL_OK")
</pallas_src>

<mosaic_0001>
module attributes {stable_mosaic.version = 11 : i64} {
  func.func @_combined_loss_kernel(%arg0: i32, %arg1: memref<2x2x4xf32, #tpu.memory_space<vmem>>, %arg2: memref<2x1xf32, #tpu.memory_space<vmem>>, %arg3: memref<2x64xf32, #tpu.memory_space<vmem>>, %arg4: memref<16x6xf32, #tpu.memory_space<vmem>>, %arg5: memref<6xf32, #tpu.memory_space<smem>>, %arg6: memref<4xf32, #tpu.memory_space<smem>>) attributes {dimension_semantics = [#tpu.dimension_semantics<arbitrary>], iteration_bounds = array<i64: 1>, scalar_prefetch = 0 : i64, scratch_operands = 1 : i64, tpu.core_type = #tpu.core_type<tc>, window_params = [{transform_indices = @transform_0, window_bounds = array<i64: 2, 2, 4>}, {transform_indices = @transform_1, window_bounds = array<i64: 2, 1>}, {transform_indices = @transform_2, window_bounds = array<i64: 2, 64>}, {pipeline_mode = #tpu.pipeline_mode<synchronous>, transform_indices = @transform_3, window_bounds = array<i64: 16, 6>}, {transform_indices = @transform_4, window_bounds = array<i64: 6>}]} {
    %c0_i32 = arith.constant 0 : i32
    %0 = arith.cmpi eq, %arg0, %c0_i32 : i32
    %1 = arith.extui %0 : i1 to i32
    %c0_i32_0 = arith.constant 0 : i32
    %2 = arith.cmpi ne, %1, %c0_i32_0 : i32
    scf.if %2 {
      %cst_25 = arith.constant 0.000000e+00 : f32
      %c0_26 = arith.constant 0 : index
      %57 = memref.load %arg6[%c0_26] : memref<4xf32, #tpu.memory_space<smem>>
      memref.store %cst_25, %arg6[%c0_26] : memref<4xf32, #tpu.memory_space<smem>>
      %cst_27 = arith.constant 0.000000e+00 : f32
      %c1_28 = arith.constant 1 : index
      %58 = memref.load %arg6[%c1_28] : memref<4xf32, #tpu.memory_space<smem>>
      memref.store %cst_27, %arg6[%c1_28] : memref<4xf32, #tpu.memory_space<smem>>
      %cst_29 = arith.constant 0.000000e+00 : f32
      %c2_30 = arith.constant 2 : index
      %59 = memref.load %arg6[%c2_30] : memref<4xf32, #tpu.memory_space<smem>>
      memref.store %cst_29, %arg6[%c2_30] : memref<4xf32, #tpu.memory_space<smem>>
      %cst_31 = arith.constant 0.000000e+00 : f32
      %c3_32 = arith.constant 3 : index
      %60 = memref.load %arg6[%c3_32] : memref<4xf32, #tpu.memory_space<smem>>
      memref.store %cst_31, %arg6[%c3_32] : memref<4xf32, #tpu.memory_space<smem>>
    } else {
    }
    %c0 = arith.constant 0 : index
    %c0_1 = arith.constant 0 : index
    %c0_2 = arith.constant 0 : index
    %3 = vector.load %arg1[%c0, %c0_1, %c0_2] : memref<2x2x4xf32, #tpu.memory_space<vmem>>, vector<1x2x4xf32>
    %4 = vector.shape_cast %3 : vector<1x2x4xf32> to vector<2x4xf32>
    %c1 = arith.constant 1 : index
    %c0_3 = arith.constant 0 : index
    %c0_4 = arith.constant 0 : index
    %5 = vector.load %arg1[%c1, %c0_3, %c0_4] : memref<2x2x4xf32, #tpu.memory_space<vmem>>, vector<1x2x4xf32>
    %6 = vector.shape_cast %5 : vector<1x2x4xf32> to vector<2x4xf32>
    %c0_5 = arith.constant 0 : index
    %c0_6 = arith.constant 0 : index
    %7 = vector.load %arg2[%c0_5, %c0_6] : memref<2x1xf32, #tpu.memory_space<vmem>>, vector<2x1xf32>
    %8 = arith.subf %4, %6 : vector<2x4xf32>
    %9 = vector.broadcast %7 : vector<2x1xf32> to vector<2x4xf32>
    %10 = arith.subf %4, %9 : vector<2x4xf32>
    %11 = vector.broadcast %7 : vector<2x1xf32> to vector<2x4xf32>
    %12 = arith.subf %6, %11 : vector<2x4xf32>
    %cst = arith.constant 0.000000e+00 : f32
    %13 = vector.broadcast %cst : f32 to vector<2x4xf32>
    %14 = arith.cmpf ogt, %10, %13 : vector<2x4xf32>
    %cst_7 = arith.constant 0.000000e+00 : f32
    %15 = vector.broadcast %cst_7 : f32 to vector<2x4xf32>
    %16 = arith.cmpf ogt, %12, %15 : vector<2x4xf32>
    %cst_8 = arith.constant 0.313261688 : f32
    %cst_9 = arith.constant 1.31326163 : f32
    %17 = vector.broadcast %cst_8 : f32 to vector<2x4xf32>
    %18 = vector.broadcast %cst_9 : f32 to vector<2x4xf32>
    %19 = arith.select %16, %17, %18 : vector<2x4xi1>, vector<2x4xf32>
    %cst_10 = arith.constant 0.693147182 : f32
    %20 = vector.broadcast %cst_10 : f32 to vector<2x4xf32>
    %21 = arith.select %14, %19, %20 : vector<2x4xi1>, vector<2x4xf32>
    %c0_11 = arith.constant 0 : index
    %22 = memref.load %arg6[%c0_11] : memref<4xf32, #tpu.memory_space<smem>>
    %23 = arith.mulf %8, %8 : vector<2x4xf32>
    %24 = vector.shape_cast %23 : vector<2x4xf32> to vector<1x2x4xf32>
    %cst_12 = arith.constant dense<0.000000e+00> : vector<1xf32>
    %25 = vector.multi_reduction <add>, %24, %cst_12 [1, 2] : vector<1x2x4xf32> to vector<1xf32>
    %26 = vector.shape_cast %25 : vector<1xf32> to vector<1x1x1xf32>
    %27 = vector.extract %26[0, 0, 0] : f32 from vector<1x1x1xf32>
    %28 = arith.addf %22, %27 : f32
    %c0_13 = arith.constant 0 : index
    %29 = memref.load %arg6[%c0_13] : memref<4xf32, #tpu.memory_space<smem>>
    memref.store %28, %arg6[%c0_13] : memref<4xf32, #tpu.memory_space<smem>>
    %c1_14 = arith.constant 1 : index
    %30 = memref.load %arg6[%c1_14] : memref<4xf32, #tpu.memory_space<smem>>
    %31 = vector.shape_cast %21 : vector<2x4xf32> to vector<1x2x4xf32>
    %cst_15 = arith.constant dense<0.000000e+00> : vector<1xf32>
    %32 = vector.multi_reduction <add>, %31, %cst_15 [1, 2] : vector<1x2x4xf32> to vector<1xf32>
    %33 = vector.shape_cast %32 : vector<1xf32> to vector<1x1x1xf32>
    %34 = vector.extract %33[0, 0, 0] : f32 from vector<1x1x1xf32>
    %35 = arith.addf %30, %34 : f32
    %c1_16 = arith.constant 1 : index
    %36 = memref.load %arg6[%c1_16] : memref<4xf32, #tpu.memory_space<smem>>
    memref.store %35, %arg6[%c1_16] : memref<4xf32, #tpu.memory_space<smem>>
    %c2 = arith.constant 2 : index
    %37 = memref.load %arg6[%c2] : memref<4xf32, #tpu.memory_space<smem>>
    %38 = math.absf %10 : vector<2x4xf32>
    %39 = vector.shape_cast %38 : vector<2x4xf32> to vector<1x2x4xf32>
    %cst_17 = arith.constant dense<0.000000e+00> : vector<1xf32>
    %40 = vector.multi_reduction <add>, %39, %cst_17 [1, 2] : vector<1x2x4xf32> to vector<1xf32>
    %41 = vector.shape_cast %40 : vector<1xf32> to vector<1x1x1xf32>
    %42 = vector.extract %41[0, 0, 0] : f32 from vector<1x1x1xf32>
    %43 = arith.addf %37, %42 : f32
    %c2_18 = arith.constant 2 : index
    %44 = memref.load %arg6[%c2_18] : memref<4xf32, #tpu.memory_space<smem>>
    memref.store %43, %arg6[%c2_18] : memref<4xf32, #tpu.memory_space<smem>>
    %c3 = arith.constant 3 : index
    %45 = memref.load %arg6[%c3] : memref<4xf32, #tpu.memory_space<smem>>
    %c0_19 = arith.constant 0 : index
    %c0_20 = arith.constant 0 : index
    %46 = vector.load %arg3[%c0_19, %c0_20] : memref<2x64xf32, #tpu.memory_space<vmem>>, vector<2x64xf32>
    %47 = math.absf %46 : vector<2x64xf32>
    %48 = vector.shape_cast %47 : vector<2x64xf32> to vector<1x2x64xf32>
    %cst_21 = arith.constant dense<0.000000e+00> : vector<1xf32>
    %49 = vector.multi_reduction <add>, %48, %cst_21 [1, 2] : vector<1x2x64xf32> to vector<1xf32>
    %50 = vector.shape_cast %49 : vector<1xf32> to vector<1x1x1xf32>
    %51 = vector.extract %50[0, 0, 0] : f32 from vector<1x1x1xf32>
    %52 = arith.addf %45, %51 : f32
    %c3_22 = arith.constant 3 : index
    %53 = memref.load %arg6[%c3_22] : memref<4xf32, #tpu.memory_space<smem>>
    memref.store %52, %arg6[%c3_22] : memref<4xf32, #tpu.memory_space<smem>>
    %c0_i32_23 = arith.constant 0 : i32
    %54 = arith.cmpi eq, %arg0, %c0_i32_23 : i32
    %55 = arith.extui %54 : i1 to i32
    %c0_i32_24 = arith.constant 0 : i32
    %56 = arith.cmpi ne, %55, %c0_i32_24 : i32
    scf.if %56 {
      %c0_25 = arith.constant 0 : index
      %57 = memref.load %arg6[%c0_25] : memref<4xf32, #tpu.memory_space<smem>>
      %cst_26 = arith.constant 1.250000e-01 : f32
      %58 = arith.mulf %57, %cst_26 : f32
      %c1_27 = arith.constant 1 : index
      %59 = memref.load %arg6[%c1_27] : memref<4xf32, #tpu.memory_space<smem>>
      %cst_28 = arith.constant 1.250000e-01 : f32
      %60 = arith.mulf %59, %cst_28 : f32
      %c2_29 = arith.constant 2 : index
      %61 = memref.load %arg6[%c2_29] : memref<4xf32, #tpu.memory_space<smem>>
      %cst_30 = arith.constant 1.250000e-01 : f32
      %62 = arith.mulf %61, %cst_30 : f32
      %cst_31 = arith.constant 5.000000e-01 : f32
      %63 = arith.cmpf ogt, %62, %cst_31 : f32
      %cst_32 = arith.constant 1.500000e+00 : f32
      %64 = arith.mulf %62, %cst_32 : f32
      %65 = arith.select %63, %64, %62 : f32
      %c3_33 = arith.constant 3 : index
      %66 = memref.load %arg6[%c3_33] : memref<4xf32, #tpu.memory_space<smem>>
      %cst_34 = arith.constant 7.812500e-03 : f32
      %67 = arith.mulf %66, %cst_34 : f32
      %c0_35 = arith.constant 0 : index
      %c0_36 = arith.constant 0 : index
      %68 = vector.load %arg4[%c0_35, %c0_36] : memref<16x6xf32, #tpu.memory_space<vmem>>, vector<16x6xf32>
      %cst_37 = arith.constant dense<0.000000e+00> : vector<6xf32>
      %69 = vector.multi_reduction <add>, %68, %cst_37 [0] : vector<16x6xf32> to vector<6xf32>
      %70 = vector.shape_cast %69 : vector<6xf32> to vector<1x6xf32>
      %cst_38 = arith.constant 1.600000e+01 : f32
      %71 = vector.broadcast %cst_38 : f32 to vector<1x6xf32>
      %72 = arith.divf %70, %71 : vector<1x6xf32>
      %73 = vector.broadcast %72 : vector<1x6xf32> to vector<16x6xf32>
      %74 = arith.subf %68, %73 : vector<16x6xf32>
      %75 = math.absf %74 : vector<16x6xf32>
      %76 = vector.shape_cast %75 : vector<16x6xf32> to vector<1x16x6xf32>
      %cst_39 = arith.constant dense<0.000000e+00> : vector<1xf32>
      %77 = vector.multi_reduction <add>, %76, %cst_39 [1, 2] : vector<1x16x6xf32> to vector<1xf32>
      %78 = vector.shape_cast %77 : vector<1xf32> to vector<1x1x1xf32>
      %79 = vector.extract %78[0, 0, 0] : f32 from vector<1x1x1xf32>
      %cst_40 = arith.constant 0.010416667 : f32
      %80 = arith.mulf %79, %cst_40 : f32
      %cst_41 = arith.constant 5.000000e-02 : f32
      %81 = arith.mulf %cst_41, %58 : f32
      %cst_42 = arith.constant 0.899999976 : f32
      %82 = arith.mulf %cst_42, %60 : f32
      %83 = arith.addf %81, %82 : f32
      %cst_43 = arith.constant 0.000000e+00 : f32
      %84 = arith.mulf %cst_43, %65 : f32
      %85 = arith.addf %83, %84 : f32
      %cst_44 = arith.constant 5.000000e-02 : f32
      %86 = arith.mulf %cst_44, %67 : f32
      %87 = arith.addf %85, %86 : f32
      %cst_45 = arith.constant 0.000000e+00 : f32
      %88 = arith.mulf %cst_45, %80 : f32
      %89 = arith.addf %87, %88 : f32
      %c0_46 = arith.constant 0 : index
      %90 = memref.load %arg5[%c0_46] : memref<6xf32, #tpu.memory_space<smem>>
      memref.store %89, %arg5[%c0_46] : memref<6xf32, #tpu.memory_space<smem>>
      %c1_47 = arith.constant 1 : index
      %91 = memref.load %arg5[%c1_47] : memref<6xf32, #tpu.memory_space<smem>>
      memref.store %58, %arg5[%c1_47] : memref<6xf32, #tpu.memory_space<smem>>
      %c2_48 = arith.constant 2 : index
      %92 = memref.load %arg5[%c2_48] : memref<6xf32, #tpu.memory_space<smem>>
      memref.store %60, %arg5[%c2_48] : memref<6xf32, #tpu.memory_space<smem>>
      %c3_49 = arith.constant 3 : index
      %93 = memref.load %arg5[%c3_49] : memref<6xf32, #tpu.memory_space<smem>>
      memref.store %65, %arg5[%c3_49] : memref<6xf32, #tpu.memory_space<smem>>
      %c4 = arith.constant 4 : index
      %94 = memref.load %arg5[%c4] : memref<6xf32, #tpu.memory_space<smem>>
      memref.store %67, %arg5[%c4] : memref<6xf32, #tpu.memory_space<smem>>
      %c5 = arith.constant 5 : index
      %95 = memref.load %arg5[%c5] : memref<6xf32, #tpu.memory_space<smem>>
      memref.store %80, %arg5[%c5] : memref<6xf32, #tpu.memory_space<smem>>
    } else {
    }
    return
  }
  func.func @transform_0(%arg0: i32) -> (i32, i32, i32) {
    %c0_i32 = arith.constant 0 : i32
    %c0_i32_0 = arith.constant 0 : i32
    %c0_i32_1 = arith.constant 0 : i32
    return %c0_i32, %arg0, %c0_i32_0 : i32, i32, i32
  }
  func.func @transform_1(%arg0: i32) -> (i32, i32) {
    %c0_i32 = arith.constant 0 : i32
    %c0_i32_0 = arith.constant 0 : i32
    return %arg0, %c0_i32 : i32, i32
  }
  func.func @transform_2(%arg0: i32) -> (i32, i32) {
    %c0_i32 = arith.constant 0 : i32
    %c0_i32_0 = arith.constant 0 : i32
    return %arg0, %c0_i32 : i32, i32
  }
  func.func @transform_3(%arg0: i32) -> (i32, i32) {
    %c0_i32 = arith.constant 0 : i32
    %c0_i32_0 = arith.constant 0 : i32
    %c0_i32_1 = arith.constant 0 : i32
    return %c0_i32, %c0_i32_0 : i32, i32
  }
  func.func @transform_4(%arg0: i32) -> i32 {
    %c0_i32 = arith.constant 0 : i32
    %c0_i32_0 = arith.constant 0 : i32
    return %c0_i32 : i32
  }
}

</mosaic_0001>

<llo_original>
// kernel: _loss_vector.1
$region0: #{_loss_vector.1}
  #allocation0 [shape = 'u32[]', space=smem, size = 0x4, offset = 0x4, fixed_abs, tag = 'smem constant byte address 0x4 - core index']
  #allocation1 [shape = 'u32[144,128]{1,0:T(1,128)}', space=vmem, size = 0x12000, scoped, tag = 'internal scratch']
  #allocation2 [shape = 'f32[4]{0:T(128)}', space=smem, size = 0x200, scoped, tag = 'scratch operand']
  %s0 = inlined_call_operand.vmem [shape: f32[2,2,4], index: 0, kind: input, shape index: {}]
  %s1 = inlined_call_operand.vmem [shape: f32[2,1], index: 1, kind: input, shape index: {}]
  %s2 = inlined_call_operand.vmem [shape: f32[2,64], index: 2, kind: input, shape index: {}]
  %s3 = inlined_call_operand.vmem [shape: f32[16,6], index: 3, kind: input, shape index: {}]
  %s4 = inlined_call_operand.hbm [shape: f32[6], index: 4, kind: output, shape index: {}]
  %s5 = sld [smem:[#allocation0]]
  $region34: #{_loss_vector.1} parent=0
    _
  %s7 = ssub.s32 1, %s5
  %s8 = scalar_select 0, %s7, %s5
  $region1: #{_loss_vector.1} parent=0
    #allocation3 [shape = 'u8[512]{0}', space=smem, size = 0x200, scoped, tag = 'output window, operand 0, single buffered']
    #allocation4 [shape = 's32[1]{0}', space=sflag, size = 0x4, scoped, tag = 'scoped memory for _loss_vector.1']
    %9 = vsyncpa [#allocation4], 0
    // Predicated region
    $region2: #{_loss_vector.1} parent=1 // pred_check
      _
    $region3: #{_loss_vector.1} parent=1 // pred_check_branch
      %11 = sbr.rel (0) target = $region5
    $region4: #{_loss_vector.1} parent=1 // pred_region
      _
    $region5: #{_loss_vector.1} parent=1 // pred_fallthru
      _
    // Predicated region
    $region6: #{_loss_vector.1} parent=1 // pred_check
      _
    $region7: #{_loss_vector.1} parent=1 // pred_check_branch
      %13 = sbr.rel (0) target = $region9
    $region8: #{_loss_vector.1} parent=1 // pred_region
      _
    $region9: #{_loss_vector.1} parent=1 // pred_fallthru
      _
    // Predicated region
    $region10: #{_loss_vector.1} parent=1 // pred_check
      _
    $region11: #{_loss_vector.1} parent=1 // pred_check_branch
      %15 = sbr.rel (0) target = $region13
    $region12: #{_loss_vector.1} parent=1 // pred_region
      _
    $region13: #{_loss_vector.1} parent=1 // pred_fallthru
      _
    // Predicated region
    $region14: #{_loss_vector.1} parent=1 // pred_check
      _
    $region15: #{_loss_vector.1} parent=1 // pred_check_branch
      %17 = sbr.rel (0) target = $region17
    $region16: #{_loss_vector.1} parent=1 // pred_region
      _
    $region17: #{_loss_vector.1} parent=1 // pred_fallthru
      _
    %p18 = scmp.eq.s32.totalorder 0, 0
    // Predicated region
    $region18: #{_loss_vector.1} parent=1 // pred_check
      %p19 = pneg %p18
    $region19: #{_loss_vector.1} parent=1 // pred_check_branch
      %21 = sbr.rel (%p19) target = $region21
    $region20: #{_loss_vector.1} parent=1 // pred_region
      %s22 = scalar_lea.smem [#allocation2], 0
      %23 = sst [smem:[%s22]] 0.0
      %s24 = scalar_lea.smem [#allocation2], 1
      %25 = sst [smem:[%s24]] 0.0
      %s26 = scalar_lea.smem [#allocation2], 2
      %27 = sst [smem:[%s26]] 0.0
      %s28 = scalar_lea.smem [#allocation2], 3
      %29 = sst [smem:[%s28]] 0.0
    $region21: #{_loss_vector.1} parent=1 // pred_fallthru
      _
    %v30 = vld [vmem:[%s0] sm:$0x3]
    %s31 = scalar_lea.vmem %s0, 2
    %v32 = vld [vmem:[%s31] sm:$0x3]
    %v33 = vld [vmem:[%s1] sm:$0x3]
    %v34 = vsub.f32 %v30, %v32
    %36 = vset.pattern.permute.xlu0 0
    %37 = vperm.xlu0 %36, %v33
    %v38 = vpop.permute.xlu0 %37
    %v40 = vsub.f32 %v30, %v38
    %v41 = vsub.f32 %v32, %v38
    %vm42 = vcmp.gt.f32.partialorder %v40, 0.0
    %vm43 = vcmp.gt.f32.partialorder %v41, 0.0
    %v44 = vsel %vm43, 0.3132617, 1.3132616
    %v45 = vsel %vm42, %v44, 0.6931472
    %s46 = sld [smem:[#allocation2]]
    %v47 = vmul.f32 %v34, %v34
    %vm48 = vcmask 25600
    %v49 = vsel %vm48, %v47, 0.0
    %50 = vadd.xlane.f32.xlu0 %v49
    %v51 = vpop.xlane.xlu0 %50
    %v52 = vrot.slane %v51, 4
    %v53 = vadd.f32 %v51, %v52
    %v54 = vrot.slane %v53, 2
    %v55 = vadd.f32 %v53, %v54
    %v56 = vrot.slane %v55, 1
    %v57 = vadd.f32 %v55, %v56
    %s58 = vtos %v57
    %s59 = sadd.f32 %s46, %s58
    %s60 = scalar_lea.smem [#allocation2], 0
    %61 = sst [smem:[%s60]] %s59
    %s62 = sld [smem:[#allocation2 + $0x1]]
    %v63 = vsel %vm48, %v45, 0.0
    %64 = vadd.xlane.f32.xlu0 %v63
    %v65 = vpop.xlane.xlu0 %64
    %v66 = vrot.slane %v65, 4
    %v67 = vadd.f32 %v65, %v66
    %v68 = vrot.slane %v67, 2
    %v69 = vadd.f32 %v67, %v68
    %v70 = vrot.slane %v69, 1
    %v71 = vadd.f32 %v69, %v70
    %s72 = vtos %v71
    %s73 = sadd.f32 %s62, %s72
    %s74 = scalar_lea.smem [#allocation2], 1
    %75 = sst [smem:[%s74]] %s73
    %s76 = sld [smem:[#allocation2 + $0x2]]
    %v77 = vand.u32 2147483647, %v40
    %v78 = vsel %vm48, %v77, 0.0
    %79 = vadd.xlane.f32.xlu0 %v78
    %v80 = vpop.xlane.xlu0 %79
    %v81 = vrot.slane %v80, 4
    %v82 = vadd.f32 %v80, %v81
    %v83 = vrot.slane %v82, 2
    %v84 = vadd.f32 %v82, %v83
    %v85 = vrot.slane %v84, 1
    %v86 = vadd.f32 %v84, %v85
    %s87 = vtos %v86
    %s88 = sadd.f32 %s76, %s87
    %s89 = scalar_lea.smem [#allocation2], 2
    %90 = sst [smem:[%s89]] %s88
    %s91 = sld [smem:[#allocation2 + $0x3]]
    %v92 = vld [vmem:[%s2] sm:$0x3]
    %v93 = vand.u32 2147483647, %v92
    %vm94 = vcmask 517120
    %v95 = vsel %vm94, %v93, 0.0
    %96 = vadd.xlane.f32.xlu0 %v95
    %v97 = vpop.xlane.xlu0 %96
    %v98 = vrot.slane %v97, 4
    %v99 = vadd.f32 %v97, %v98
    %v100 = vrot.slane %v99, 2
    %v101 = vadd.f32 %v99, %v100
    %v102 = vrot.slane %v101, 1
    %v103 = vadd.f32 %v101, %v102
    %s104 = vtos %v103
    %s105 = sadd.f32 %s91, %s104
    %s106 = scalar_lea.smem [#allocation2], 3
    %107 = sst [smem:[%s106]] %s105
    // Predicated region
    $region22: #{_loss_vector.1} parent=1 // pred_check
      %p108 = pneg %p18
    $region23: #{_loss_vector.1} parent=1 // pred_check_branch
      %110 = sbr.rel (%p108) target = $region25
    $region24: #{_loss_vector.1} parent=1 // pred_region
      %s111 = sld [smem:[#allocation2]]
      %s112 = smul.f32 %s111, 0.125
      %s113 = sld [smem:[#allocation2 + $0x1]]
      %s114 = smul.f32 %s113, 0.125
      %s115 = sld [smem:[#allocation2 + $0x2]]
      %s116 = smul.f32 %s115, 0.125
      %p117 = scmp.gt.f32.partialorder %s116, 0.5
      %s118 = smul.f32 %s116, 1.5
      %s119 = scalar_select %p117, %s118, %s116
      %s120 = sld [smem:[#allocation2 + $0x3]]
      %s121 = smul.f32 %s120, 0.0078125
      %v122 = vld [vmem:[%s3] sm:$0xff]
      %v123 = vld [vmem:[%s3 + $0x8] sm:$0xff]
      %vm124 = vcmask 48128
      %v125 = vsel %vm124, %v122, 0.0
      %v126 = vsel %vm124, %v123, 0.0
      %v127 = vadd.f32 %v125, %v126
      %v128 = vrot.slane %v127, 4
      %v129 = vadd.f32 %v127, %v128
      %v130 = vrot.slane %v129, 2
      %v131 = vadd.f32 %v129, %v130
      %v132 = vrot.slane %v131, 1
      %v133 = vadd.f32 %v131, %v132
      %v134 = vrcp.pop 16.0
      %v135 = vmul.f32 %v133, %v134
      %v136 = vsub.f32 %v122, %v135
      %v137 = vsub.f32 %v123, %v135
      %v138 = vand.u32 2147483647, %v136
      %v139 = vand.u32 2147483647, %v137
      %v140 = vsel %vm124, %v138, 0.0
      %v141 = vsel %vm124, %v139, 0.0
      %v142 = vadd.f32 %v140, %v141
      %143 = vadd.xlane.f32.xlu0 %v142
      %v144 = vpop.xlane.xlu0 %143
      %v145 = vrot.slane %v144, 4
      %v146 = vadd.f32 %v144, %v145
      %v147 = vrot.slane %v146, 2
      %v148 = vadd.f32 %v146, %v147
      %v149 = vrot.slane %v148, 1
      %v150 = vadd.f32 %v148, %v149
      %s151 = vtos %v150
      %s152 = smul.f32 %s151, 0.010416667
      %s153 = smul.f32 %s112, 0.05
      %s154 = smul.f32 %s114, 0.9
      %s155 = sadd.f32 %s153, %s154
      %s156 = smul.f32 %s119, 0.0
      %s157 = sadd.f32 %s155, %s156
      %s158 = smul.f32 %s121, 0.05
      %s159 = sadd.f32 %s157, %s158
      %s160 = smul.f32 %s152, 0.0
      %s161 = sadd.f32 %s159, %s160
      %s162 = scalar_lea.smem [#allocation3], 0
      %163 = sst [smem:[%s162]] %s161
      %s164 = scalar_lea.smem [#allocation3], 1
      %165 = sst [smem:[%s164]] %s112
      %s166 = scalar_lea.smem [#allocation3], 2
      %167 = sst [smem:[%s166]] %s114
      %s168 = scalar_lea.smem [#allocation3], 3
      %169 = sst [smem:[%s168]] %s119
      %s170 = scalar_lea.smem [#allocation3], 4
      %171 = sst [smem:[%s170]] %s121
      %s172 = scalar_lea.smem [#allocation3], 5
      %173 = sst [smem:[%s172]] %s152
    $region25: #{_loss_vector.1} parent=1 // pred_fallthru
      _
    // Predicated region
    $region26: #{_loss_vector.1} parent=1 // pred_check
      _
    $region27: #{_loss_vector.1} parent=1 // pred_check_branch
      %175 = sbr.rel (0) target = $region29
    $region28: #{_loss_vector.1} parent=1 // pred_region
      %s177 = ssub.s32 16, 16
      %178 = vsyncadd [#allocation4], %s177
      %181 = dma.smem_to_hbm [#allocation3], 16, %s4, [#allocation4]
    $region29: #{_loss_vector.1} parent=1 // pred_fallthru
      _
    // Predicated region
    $region30: #{_loss_vector.1} parent=1 // pred_check
      _
    $region31: #{_loss_vector.1} parent=1 // pred_check_branch
      %183 = sbr.rel (0) target = $region33
    $region32: #{_loss_vector.1} parent=1 // pred_region
      %184 = dma.done [#allocation4], 16
    $region33: #{_loss_vector.1} parent=1 // pred_fallthru
      _
    %185 = sfence
    %186 = vsyncpa [#allocation4], 1

</llo_original>
